<compile_context>
chip_gen: v6e
topology: v6e:2x2x1
jax: 0.10.0
libtpu: 0.0.40
codegen_flags: <defaults>
</compile_context>

<pallas_src>
import functools
import math

import jax
import jax.numpy as jnp
from jax.experimental import pallas as pl
from jax.experimental.pallas import tpu as pltpu


def _round_up(x, m):
    return ((x + m - 1) // m) * m


def _causal_conv1d_kernel(x_ref, w_ref, b_ref, o_ref, win_ref, *,
                          kernel_size, dilation, pad, pad_al, use_vpu,
                          rows_in, rows_out):
    """One (batch-group, time-tile) grid step.

    x_ref:   (1, rows_in, tile_t)    current time tile (NCL, batch-packed rows)
    w_ref:   MXU path: (K, rows_out, rows_in)    per-tap (block-diag) weights
             VPU path: (K*rows_in, rows_out, 1)  per-(tap, channel) columns
    b_ref:   (rows_out, 1)           bias column (f32, resident)
    o_ref:   (1, rows_out, tile_t)   output tile
    win_ref: (rows_in, pad_al + tile_t) staging window; the halo sits in the
             last `pad` columns before the 128-aligned offset `pad_al`, the
             current tile lives at [pad_al, pad_al + tile_t).
    """
    tile_t = o_ref.shape[-1]
    t_idx = pl.program_id(1)
    halo_lo = pad_al - pad

    @pl.when(t_idx == 0)
    def _():
        # Left edge of the sequence: the halo is the causal zero padding.
        win_ref[:, halo_lo:pad_al] = jnp.zeros((rows_in, pad), win_ref.dtype)

    @pl.when(t_idx > 0)
    def _():
        # Carry the last `pad` time steps of the previous tile (still staged
        # at the tail of the window from the previous grid step).  Tiny copy.
        win_ref[:, halo_lo:pad_al] = win_ref[:, pad_al + tile_t - pad:
                                             pad_al + tile_t]

    # Aligned, full-width staging store (pad_al is a multiple of 128, tile_t
    # is a multiple of 128 whenever the sequence is tiled, offsets are static
    # -> plain unmasked vst, no lane rotation / masked partial stores).
    win_ref[:, pad_al:pad_al + tile_t] = x_ref[0]

    if use_vpu:
        # Tiny-channel path: VPU broadcast-FMA over the K*Cin taps.  No MXU
        # push/pop latency, no operand marshalling.
        acc = jnp.zeros((rows_out, tile_t), jnp.float32)
        for k in range(kernel_size):
            off = halo_lo + k * dilation
            for ci in range(rows_in):
                w_col = w_ref[k * rows_in + ci].astype(jnp.float32)  # (rows_out, 1)
                tap_row = win_ref[ci:ci + 1, off:off + tile_t]       # (1, tile_t)
                acc = acc + w_col * tap_row.astype(jnp.float32)
    else:
        # General path: K accumulated matmuls (no (K*Cin, tile_t) concat).
        acc = None
        for k in range(kernel_size):
            off = halo_lo + k * dilation
            tap = win_ref[:, off:off + tile_t]                       # (rows_in, tile_t)
            part = jax.lax.dot_general(
                w_ref[k], tap,
                dimension_numbers=(((1,), (0,)), ((), ())),
                preferred_element_type=jnp.float32)                  # (rows_out, tile_t)
            acc = part if acc is None else acc + part

    o_ref[0] = (acc + b_ref[...].astype(jnp.float32)).astype(o_ref.dtype)


def _vmem_budgets():
    """Generation-aware VMEM limits: v7x has 64 MiB/TC, v5e/v6e 128 MiB."""
    cap = None
    try:
        cap = getattr(pltpu.get_tpu_info(), "vmem_capacity_bytes", None)
    except Exception:
        cap = None
    if not cap or cap <= 0:
        cap = 64 * 1024 * 1024                      # assume smallest generation
    limit = min(int(cap * 0.70), 96 * 1024 * 1024)  # ~45 MiB v7x, ~90 MiB v5e/v6e
    return limit, limit // 2                        # (vmem_limit_bytes, tile budget)


def _pick_time_tile(T, rows_in, rows_out, pad, itemsize, tile_budget):
    """Largest 128-multiple time tile that fits the per-generation budget."""
    if T <= 128:
        return T
    # Bytes per time column: double-buffered in/out blocks + staging window
    # + f32 accumulator (+ slack).
    per_col = (3 * rows_in + 2 * rows_out) * itemsize + 4 * rows_out + 32
    tile = int(tile_budget) // max(per_col, 1)
    tile = max((tile // 128) * 128, 128, _round_up(pad, 128))
    tile = min(tile, (T // 128) * 128)
    if tile < pad:                                  # exotic dilation: 1 tile
        tile = T
    return tile


def causal_conv1d(x_ncl, weight, bias, *, dilation=1, tile_t=None,
                  pack_batch=True, use_vpu=None, compute_dtype=None,
                  vmem_limit_bytes=None):
    """Causal 1-D convolution matching
         y = Conv1d(x, padding=(K-1)*dilation, dilation=dilation)(x)[:, :, :-pad]
    x_ncl:  (B, Cin, T)     (PyTorch NCL layout, kept throughout)
    weight: (Cout, Cin, K)  (PyTorch Conv1d layout)
    bias:   (Cout,)
    compute_dtype: optional low-precision I/O (e.g. jnp.bfloat16); f32 accum.
    returns (B, Cout, T)
    """
    B, Cin, T = x_ncl.shape
    Cout, Cin_w, K = weight.shape
    assert Cin == Cin_w
    pad = (K - 1) * dilation
    # K == 1 is excluded on purpose: the PyTorch module does y[:, :, :-0],
    # which returns an empty tensor (module quirk preserved here).
    assert pad > 0, "kernel_size must be > 1 (PyTorch [:, :, :-0] is empty)"

    if compute_dtype is not None:
        x_ncl = x_ncl.astype(compute_dtype)
        weight = weight.astype(compute_dtype)
    dtype = x_ncl.dtype
    itemsize = jnp.dtype(dtype).itemsize

    # ---- narrow-channel batch packing (fill the 8 f32 sublanes) ------------
    Bb = 1
    if pack_batch and Cin < 8 and use_vpu is not True:
        cand = max(1, 8 // Cin)
        if cand > 1 and B % cand == 0:
            Bb = cand
    Bg = B // Bb
    rows_in, rows_out = Bb * Cin, Bb * Cout
    x_p = x_ncl.reshape(Bg, rows_in, T)             # free (contiguous) reshape

    # ---- compute-path selection ---------------------------------------------
    if use_vpu is None:
        use_vpu = (Bb == 1 and rows_out <= 8 and K * rows_in <= 32)
    if use_vpu:
        assert Bb == 1

    # ---- weights / bias, laid out for the chosen path -----------------------
    if use_vpu:
        # (K*Cin, Cout, 1): one lane-broadcastable column per (tap, channel).
        w_arr = jnp.transpose(weight, (2, 1, 0)).reshape(K * Cin, Cout)[..., None]
        w_spec_shape = (K * Cin, Cout, 1)
    else:
        w_taps = jnp.transpose(weight, (2, 0, 1))                 # (K, Cout, Cin)
        if Bb > 1:
            eye = jnp.eye(Bb, dtype=w_taps.dtype)
            w_taps = jnp.einsum("koc,ij->kiojc", w_taps, eye)
            w_taps = w_taps.reshape(K, rows_out, rows_in)          # block-diag
        w_arr = w_taps
        w_spec_shape = (K, rows_out, rows_in)
    b_col = jnp.tile(bias.astype(jnp.float32), (Bb,)).reshape(rows_out, 1)

    # ---- tiling (generation-aware VMEM budget) -------------------------------
    auto_limit, tile_budget = _vmem_budgets()
    if vmem_limit_bytes is None:
        vmem_limit_bytes = auto_limit
    if tile_t is None:
        tile_t = _pick_time_tile(T, rows_in, rows_out, pad, itemsize, tile_budget)
    n_t = pl.cdiv(T, tile_t)
    assert n_t == 1 or tile_t >= pad, (
        f"time tile ({tile_t}) must cover the causal halo ({pad})")
    assert tile_t == T or tile_t % 128 == 0, (
        "tile_t must be a multiple of 128 (lane-dense stores) or the full T")
    pad_al = _round_up(pad, 128)                    # 128-aligned staging offset

    kernel = functools.partial(
        _causal_conv1d_kernel, kernel_size=K, dilation=dilation, pad=pad,
        pad_al=pad_al, use_vpu=use_vpu, rows_in=rows_in, rows_out=rows_out)

    # Resident (constant-index) operands: single-buffer them only when the
    # redundant second buffer is big enough to shrink the feasible tile_t.
    w_kwargs = {}
    if int(w_arr.size) * itemsize > (1 << 20):
        w_kwargs = dict(pipeline_mode=pl.Buffered(1))
    w_spec = pl.BlockSpec(w_spec_shape, lambda b, i: (0, 0, 0), **w_kwargs)
    b_spec = pl.BlockSpec((rows_out, 1), lambda b, i: (0, 0))

    flops = 2 * B * T * K * Cin * Cout
    bytes_accessed = (B * Cin * T * itemsize            # x (read once)
                      + int(w_arr.size) * itemsize      # weights (resident)
                      + rows_out * 4                     # bias
                      + B * Cout * T * itemsize)         # y

    out = pl.pallas_call(
        kernel,
        out_shape=jax.ShapeDtypeStruct((Bg, rows_out, T), dtype),
        grid_spec=pltpu.PrefetchScalarGridSpec(
            num_scalar_prefetch=0,
            grid=(Bg, n_t),
            in_specs=[
                pl.BlockSpec((1, rows_in, tile_t), lambda b, i: (b, 0, i)),
                w_spec,
                b_spec,
            ],
            out_specs=pl.BlockSpec((1, rows_out, tile_t), lambda b, i: (b, 0, i)),
            scratch_shapes=[pltpu.VMEM((rows_in, pad_al + tile_t), dtype)],
        ),
        compiler_params=pltpu.CompilerParams(
            # Batch-group axis is independent -> megacore-parallel; the time
            # axis carries the causal halo in scratch -> must stay "arbitrary".
            dimension_semantics=("parallel", "arbitrary"),
            vmem_limit_bytes=int(vmem_limit_bytes),
        ),
        cost_estimate=pl.CostEstimate(
            flops=flops, transcendentals=0, bytes_accessed=bytes_accessed),
    )(x_p, w_arr, b_col)

    return out.reshape(B, Cout, T)                   # free (contiguous) reshape


def _reference(x_ncl, weight, bias, dilation):
    """Pure-JAX reference mirroring the PyTorch forward exactly."""
    K = weight.shape[-1]
    pad = (K - 1) * dilation
    y = jax.lax.conv_general_dilated(
        x_ncl, weight,
        window_strides=(1,),
        padding=[(pad, pad)],
        rhs_dilation=(dilation,),
        dimension_numbers=("NCH", "OIH", "NCH"),
    )
    y = y + bias[None, :, None]
    return y[:, :, :-pad]


if __name__ == "__main__":
    B, Cin, Cout = 2, 4, 6
    K, dilation = 3, 2

    key = jax.random.PRNGKey(0)
    kx, kw, kb = jax.random.split(key, 3)

    # Deterministic PyTorch-style Conv1d init: U(-b, b), b = 1/sqrt(Cin*K)
    bound = 1.0 / math.sqrt(Cin * K)
    weight = jax.random.uniform(kw, (Cout, Cin, K), jnp.float32, -bound, bound)
    bias = jax.random.uniform(kb, (Cout,), jnp.float32, -bound, bound)

    # (T, forced tile_t, pack_batch):
    #   - packed MXU path, single tile
    #   - unpacked VPU small-channel path, multi-tile halo carry
    #   - packed MXU path, halo carry + partial last tile
    cases = [(16, None, True), (384, 128, False), (200, 128, True)]
    for T, forced_tile, pack in cases:
        x = jax.random.normal(kx, (B, Cin, T), dtype=jnp.float32)
        out = causal_conv1d(x, weight, bias, dilation=dilation,
                            tile_t=forced_tile, pack_batch=pack)
        out = jax.block_until_ready(out)

        ref = _reference(x, weight, bias, dilation)
        assert out.shape == (B, Cout, T), out.shape
        assert jnp.allclose(out, ref, atol=1e-5, rtol=1e-5), (
            f"mismatch vs reference for T={T}, tile_t={forced_tile}, pack={pack}")

    print("KERNEL_OK")
</pallas_src>

<mosaic_0001>
module attributes {stable_mosaic.version = 11 : i64} {
  func.func @_causal_conv1d_kernel(%arg0: i32, %arg1: i32, %arg2: memref<1x8x16xf32, #tpu.memory_space<vmem>>, %arg3: memref<3x12x8xf32, #tpu.memory_space<vmem>>, %arg4: memref<12x1xf32, #tpu.memory_space<vmem>>, %arg5: memref<1x12x16xf32, #tpu.memory_space<vmem>>, %arg6: memref<8x144xf32, #tpu.memory_space<vmem>>) attributes {dimension_semantics = [#tpu.dimension_semantics<parallel>, #tpu.dimension_semantics<arbitrary>], iteration_bounds = array<i64: 1, 1>, scalar_prefetch = 0 : i64, scratch_operands = 1 : i64, tpu.core_type = #tpu.core_type<tc>, window_params = [{transform_indices = @transform_0, window_bounds = array<i64: 1, 8, 16>}, {pipeline_mode = #tpu.pipeline_mode<synchronous>, transform_indices = @transform_1, window_bounds = array<i64: 3, 12, 8>}, {pipeline_mode = #tpu.pipeline_mode<synchronous>, transform_indices = @transform_2, window_bounds = array<i64: 12, 1>}, {transform_indices = @transform_3, window_bounds = array<i64: 1, 12, 16>}]} {
    %c0_i32 = arith.constant 0 : i32
    %0 = arith.cmpi eq, %arg1, %c0_i32 : i32
    %1 = arith.extui %0 : i1 to i32
    %c0_i32_0 = arith.constant 0 : i32
    %2 = arith.cmpi ne, %1, %c0_i32_0 : i32
    scf.if %2 {
      %cst_24 = arith.constant 0.000000e+00 : f32
      %29 = vector.broadcast %cst_24 : f32 to vector<8x4xf32>
      %c0_25 = arith.constant 0 : index
      %c124_26 = arith.constant 124 : index
      %30 = vector.load %arg6[%c0_25, %c124_26] : memref<8x144xf32, #tpu.memory_space<vmem>>, vector<8x4xf32>
      tpu.vector_store %arg6[%c0_25, %c124_26], %29 {strides = array<i32>} : memref<8x144xf32, #tpu.memory_space<vmem>>, vector<8x4xf32>,
    } else {
    }
    %c0_i32_1 = arith.constant 0 : i32
    %3 = arith.cmpi sgt, %arg1, %c0_i32_1 : i32
    %4 = arith.extui %3 : i1 to i32
    %c0_i32_2 = arith.constant 0 : i32
    %5 = arith.cmpi ne, %4, %c0_i32_2 : i32
    scf.if %5 {
      %c0_24 = arith.constant 0 : index
      %c140 = arith.constant 140 : index
      %29 = vector.load %arg6[%c0_24, %c140] : memref<8x144xf32, #tpu.memory_space<vmem>>, vector<8x4xf32>
      %c0_25 = arith.constant 0 : index
      %c124_26 = arith.constant 124 : index
      %30 = vector.load %arg6[%c0_25, %c124_26] : memref<8x144xf32, #tpu.memory_space<vmem>>, vector<8x4xf32>
      tpu.vector_store %arg6[%c0_25, %c124_26], %29 {strides = array<i32>} : memref<8x144xf32, #tpu.memory_space<vmem>>, vector<8x4xf32>,
    } else {
    }
    %c0 = arith.constant 0 : index
    %c0_3 = arith.constant 0 : index
    %c0_4 = arith.constant 0 : index
    %6 = vector.load %arg2[%c0, %c0_3, %c0_4] : memref<1x8x16xf32, #tpu.memory_space<vmem>>, vector<1x8x16xf32>
    %7 = vector.shape_cast %6 : vector<1x8x16xf32> to vector<8x16xf32>
    %c0_5 = arith.constant 0 : index
    %c128 = arith.constant 128 : index
    %8 = vector.load %arg6[%c0_5, %c128] : memref<8x144xf32, #tpu.memory_space<vmem>>, vector<8x16xf32>
    tpu.vector_store %arg6[%c0_5, %c128], %7 {strides = array<i32>} : memref<8x144xf32, #tpu.memory_space<vmem>>, vector<8x16xf32>,
    %c0_6 = arith.constant 0 : index
    %c124 = arith.constant 124 : index
    %9 = vector.load %arg6[%c0_6, %c124] : memref<8x144xf32, #tpu.memory_space<vmem>>, vector<8x16xf32>
    %c0_7 = arith.constant 0 : index
    %c0_8 = arith.constant 0 : index
    %c0_9 = arith.constant 0 : index
    %10 = vector.load %arg3[%c0_7, %c0_8, %c0_9] : memref<3x12x8xf32, #tpu.memory_space<vmem>>, vector<1x12x8xf32>
    %11 = vector.shape_cast %10 : vector<1x12x8xf32> to vector<12x8xf32>
    %cst = arith.constant dense<0.000000e+00> : vector<12x16xf32>
    %12 = tpu.matmul %11, %9, %cst {dimension_numbers = #tpu.dot_dimension_numbers<[1], [0], [0], [1], [0, 0, 1, 1], [], []>} : vector<12x8xf32>, vector<8x16xf32>, vector<12x16xf32> -> vector<12x16xf32>
    %c0_10 = arith.constant 0 : index
    %c126 = arith.constant 126 : index
    %13 = vector.load %arg6[%c0_10, %c126] : memref<8x144xf32, #tpu.memory_space<vmem>>, vector<8x16xf32>
    %c1 = arith.constant 1 : index
    %c0_11 = arith.constant 0 : index
    %c0_12 = arith.constant 0 : index
    %14 = vector.load %arg3[%c1, %c0_11, %c0_12] : memref<3x12x8xf32, #tpu.memory_space<vmem>>, vector<1x12x8xf32>
    %15 = vector.shape_cast %14 : vector<1x12x8xf32> to vector<12x8xf32>
    %cst_13 = arith.constant dense<0.000000e+00> : vector<12x16xf32>
    %16 = tpu.matmul %15, %13, %cst_13 {dimension_numbers = #tpu.dot_dimension_numbers<[1], [0], [0], [1], [0, 0, 1, 1], [], []>} : vector<12x8xf32>, vector<8x16xf32>, vector<12x16xf32> -> vector<12x16xf32>
    %17 = arith.addf %12, %16 : vector<12x16xf32>
    %c0_14 = arith.constant 0 : index
    %c128_15 = arith.constant 128 : index
    %18 = vector.load %arg6[%c0_14, %c128_15] : memref<8x144xf32, #tpu.memory_space<vmem>>, vector<8x16xf32>
    %c2 = arith.constant 2 : index
    %c0_16 = arith.constant 0 : index
    %c0_17 = arith.constant 0 : index
    %19 = vector.load %arg3[%c2, %c0_16, %c0_17] : memref<3x12x8xf32, #tpu.memory_space<vmem>>, vector<1x12x8xf32>
    %20 = vector.shape_cast %19 : vector<1x12x8xf32> to vector<12x8xf32>
    %cst_18 = arith.constant dense<0.000000e+00> : vector<12x16xf32>
    %21 = tpu.matmul %20, %18, %cst_18 {dimension_numbers = #tpu.dot_dimension_numbers<[1], [0], [0], [1], [0, 0, 1, 1], [], []>} : vector<12x8xf32>, vector<8x16xf32>, vector<12x16xf32> -> vector<12x16xf32>
    %22 = arith.addf %17, %21 : vector<12x16xf32>
    %c0_19 = arith.constant 0 : index
    %c0_20 = arith.constant 0 : index
    %23 = vector.load %arg4[%c0_19, %c0_20] : memref<12x1xf32, #tpu.memory_space<vmem>>, vector<12x1xf32>
    %24 = vector.broadcast %23 : vector<12x1xf32> to vector<12x16xf32>
    %25 = arith.addf %22, %24 : vector<12x16xf32>
    %c0_21 = arith.constant 0 : index
    %c0_22 = arith.constant 0 : index
    %c0_23 = arith.constant 0 : index
    %26 = vector.load %arg5[%c0_21, %c0_22, %c0_23] : memref<1x12x16xf32, #tpu.memory_space<vmem>>, vector<1x12x16xf32>
    %27 = vector.shape_cast %26 : vector<1x12x16xf32> to vector<12x16xf32>
    %28 = vector.shape_cast %25 : vector<12x16xf32> to vector<1x12x16xf32>
    tpu.vector_store %arg5[%c0_21, %c0_22, %c0_23], %28 {strides = array<i32>} : memref<1x12x16xf32, #tpu.memory_space<vmem>>, vector<1x12x16xf32>,
    return
  }
  func.func @transform_0(%arg0: i32, %arg1: i32) -> (i32, i32, i32) {
    %c0_i32 = arith.constant 0 : i32
    %c0_i32_0 = arith.constant 0 : i32
    return %arg0, %c0_i32, %arg1 : i32, i32, i32
  }
  func.func @transform_1(%arg0: i32, %arg1: i32) -> (i32, i32, i32) {
    %c0_i32 = arith.constant 0 : i32
    %c0_i32_0 = arith.constant 0 : i32
    %c0_i32_1 = arith.constant 0 : i32
    %c0_i32_2 = arith.constant 0 : i32
    return %c0_i32, %c0_i32_0, %c0_i32_1 : i32, i32, i32
  }
  func.func @transform_2(%arg0: i32, %arg1: i32) -> (i32, i32) {
    %c0_i32 = arith.constant 0 : i32
    %c0_i32_0 = arith.constant 0 : i32
    %c0_i32_1 = arith.constant 0 : i32
    return %c0_i32, %c0_i32_0 : i32, i32
  }
  func.func @transform_3(%arg0: i32, %arg1: i32) -> (i32, i32, i32) {
    %c0_i32 = arith.constant 0 : i32
    %c0_i32_0 = arith.constant 0 : i32
    return %arg0, %c0_i32, %arg1 : i32, i32, i32
  }
}

</mosaic_0001>

<llo_original>
// kernel: tpu_custom_call.1
$region0: #{tpu_custom_call.1}
  #allocation0 [shape = 'u32[]', space=smem, size = 0x4, offset = 0x4, fixed_abs, tag = 'smem constant byte address 0x4 - core index']
  #allocation1 [shape = 'u32[144,128]{1,0:T(1,128)}', space=vmem, size = 0x12000, scoped, tag = 'internal scratch']
  #allocation2 [shape = 'f32[8,144]{1,0:T(8,128)}', space=vmem, size = 0x2000, scoped, tag = 'scratch operand']
  %s0 = inlined_call_operand.vmem [shape: f32[1,8,16], index: 0, kind: input, shape index: {}]
  %s1 = inlined_call_operand.vmem [shape: f32[3,12,8], index: 1, kind: input, shape index: {}]
  %s2 = inlined_call_operand.vmem [shape: f32[12,1], index: 2, kind: input, shape index: {}]
  %s3 = inlined_call_operand.vmem [shape: f32[1,12,16], index: 3, kind: output, shape index: {}]
  %s4 = sld [smem:[#allocation0]]
  $region30: #{tpu_custom_call.1} parent=0
    _
  %s6 = ssub.s32 1, %s4
  %s7 = scalar_select 0, %s6, %s4
  // Predicated region
  $region2: #{tpu_custom_call.1} parent=0 // pred_check
    _
  $region3: #{tpu_custom_call.1} parent=0 // pred_check_branch
    %9 = sbr.rel (0) target = $region5
  $region4: #{tpu_custom_call.1} parent=0 // pred_region
    _
  $region5: #{tpu_custom_call.1} parent=0 // pred_fallthru
    _
  // Predicated region
  $region6: #{tpu_custom_call.1} parent=0 // pred_check
    _
  $region7: #{tpu_custom_call.1} parent=0 // pred_check_branch
    %11 = sbr.rel (0) target = $region9
  $region8: #{tpu_custom_call.1} parent=0 // pred_region
    _
  $region9: #{tpu_custom_call.1} parent=0 // pred_fallthru
    _
  // Predicated region
  $region10: #{tpu_custom_call.1} parent=0 // pred_check
    _
  $region11: #{tpu_custom_call.1} parent=0 // pred_check_branch
    %13 = sbr.rel (0) target = $region13
  $region12: #{tpu_custom_call.1} parent=0 // pred_region
    _
  $region13: #{tpu_custom_call.1} parent=0 // pred_fallthru
    _
  %p14 = scmp.eq.s32.totalorder 0, 0
  // Predicated region
  $region14: #{tpu_custom_call.1} parent=0 // pred_check
    %p15 = pneg %p14
  $region15: #{tpu_custom_call.1} parent=0 // pred_check_branch
    %17 = sbr.rel (%p15) target = $region17
  $region16: #{tpu_custom_call.1} parent=0 // pred_region
    %vm18 = vcmask 1048544
    %19 = vst.msk [vmem:[#allocation2] sm:$0xff] %vm18, 0.0
  $region17: #{tpu_custom_call.1} parent=0 // pred_fallthru
    _
  %p20 = scmp.gt.s32.totalorder 0, 0
  // Predicated region
  $region18: #{tpu_custom_call.1} parent=0 // pred_check
    %p21 = pneg %p20
  $region19: #{tpu_custom_call.1} parent=0 // pred_check_branch
    %23 = sbr.rel (%p21) target = $region21
  $region20: #{tpu_custom_call.1} parent=0 // pred_region
    %v24 = vld [vmem:[#allocation2 + $0x8] sm:$0xff]
    %26 = vrot.lane.b32.xlu0 %v24, 112
    %v27 = vpop.permute.xlu0 %26
    %vm29 = vcmask 1048544
    %30 = vst.msk [vmem:[#allocation2] sm:$0xff] %vm29, %v27
  $region21: #{tpu_custom_call.1} parent=0 // pred_fallthru
    _
  %v31 = vld [vmem:[%s0] sm:$0xff]
  %vm32 = vcmask 130048
  %33 = vst.msk [vmem:[#allocation2 + $0x8] sm:$0xff] %vm32, %v31
  %v34 = vld [vmem:[#allocation2] sm:$0xff]
  %v35 = vld [vmem:[#allocation2 + $0x8] sm:$0xff]
  %v36 = vld [vmem:[%s1] sm:$0xff]
  %v37 = vld [vmem:[%s1 + $0x8] sm:$0xf]
  %s38 = scalar_lea.vmem %s1, 16
  %v39 = vld [vmem:[%s38] sm:$0xff]
  %v40 = vld [vmem:[%s38 + $0x8] sm:$0xf]
  %43 = vrot.lane.b32.xlu0 %v34, 2
  %v44 = vpop.permute.xlu0 %43
  %45 = vrot.lane.b32.xlu0 %v35, 2
  %v46 = vpop.permute.xlu0 %45
  %vm47 = vcmask 15360
  %v48 = vsel %vm47, %v44, %v46
  %vm50 = vcmask 64512
  %v52 = vsel %vm50, %v39, 0
  %v55 = vsel %vm50, %v40, 0
  %57 = vmatprep.subr.mxu0 0.0
  %58 = vmatpush1.msra.mxu0 0.0
  %59 = vmatprep.subr.mxu0 0.0
  %60 = vmatpush1.msra.mxu0 0.0
  %61 = vmatprep.subr.mxu0 0.0
  %62 = vmatpush1.msra.mxu0 0.0
  %63 = vmatprep.subr.mxu0 0.0
  %64 = vmatpush1.msra.mxu0 0.0
  %65 = vmatprep.subr.mxu0 0.0
  %66 = vmatpush1.msra.mxu0 0.0
  %67 = vmatprep.subr.mxu0 0.0
  %68 = vmatpush1.msra.mxu0 0.0
  %69 = vmatprep.subr.mxu0 0.0
  %70 = vmatpush1.msra.mxu0 0.0
  %71 = vmatprep.subr.mxu0 0.0
  %72 = vmatpush1.msra.mxu0 0.0
  %73 = vmatprep.subr.mxu0 0.0
  %74 = vmatpush1.msra.mxu0 0.0
  %75 = vmatprep.subr.mxu0 0.0
  %76 = vmatpush1.msra.mxu0 0.0
  %77 = vmatprep.subr.mxu0 0.0
  %78 = vmatpush1.msra.mxu0 0.0
  %79 = vmatprep.subr.mxu0 0.0
  %80 = vmatpush1.msra.mxu0 0.0
  %81 = vmatprep.subr.mxu0 0.0
  %82 = vmatpush1.msra.mxu0 0.0
  %83 = vmatprep.subr.mxu0 0.0
  %84 = vmatpush1.msra.mxu0 0.0
  %85 = vmatprep.subr.mxu0 0.0
  %86 = vmatpush1.msra.mxu0 0.0
  %87 = vmatprep.subr.mxu0 0.0
  %88 = vmatpush1.msra.mxu0 %v48
  %89 = vmatprep.subr.mxu0 0.0
  %90 = vmatpush2.msra.mxu0 0.0
  %91 = vmatprep.subr.mxu0 0.0
  %92 = vmatpush2.msra.mxu0 0.0
  %93 = vmatprep.subr.mxu0 0.0
  %94 = vmatpush2.msra.mxu0 0.0
  %95 = vmatprep.subr.mxu0 0.0
  %96 = vmatpush2.msra.mxu0 0.0
  %97 = vmatprep.subr.mxu0 0.0
  %98 = vmatpush2.msra.mxu0 0.0
  %99 = vmatprep.subr.mxu0 0.0
  %100 = vmatpush2.msra.mxu0 0.0
  %101 = vmatprep.subr.mxu0 0.0
  %102 = vmatpush2.msra.mxu0 0.0
  %103 = vmatprep.subr.mxu0 0.0
  %104 = vmatpush2.msra.mxu0 0.0
  %105 = vmatprep.subr.mxu0 0.0
  %106 = vmatpush2.msra.mxu0 0.0
  %107 = vmatprep.subr.mxu0 0.0
  %108 = vmatpush2.msra.mxu0 0.0
  %109 = vmatprep.subr.mxu0 0.0
  %110 = vmatpush2.msra.mxu0 0.0
  %111 = vmatprep.subr.mxu0 0.0
  %112 = vmatpush2.msra.mxu0 0.0
  %113 = vmatprep.subr.mxu0 0.0
  %114 = vmatpush2.msra.mxu0 0.0
  %115 = vmatprep.subr.mxu0 0.0
  %116 = vmatpush2.msra.mxu0 0.0
  %117 = vmatprep.subr.mxu0 0.0
  %118 = vmatpush2.msra.mxu0 0.0
  %119 = vmatprep.subr.mxu0 0.0
  %120 = vmatpush2.msra.mxu0 0.0
  %121 = vmatprep.mubr.f32.mxu0 0.0
  %122 = vmatmul.mubr.f32.gmra.mxu0 %v52
  %v123 = vpop.f32.mrf.mxu0
  %v124 = vadd.f32 0.0, %v123
  %v125 = vpop.f32.mrf.mxu0
  %126 = vmatprep.mubr.f32.mxu0 0.0
  %127 = vmatmul.mubr.f32.gmra.mxu0 %v55
  %v128 = vpop.f32.mrf.mxu0
  %v129 = vadd.f32 0.0, %v128
  %v130 = vpop.f32.mrf.mxu0
  %131 = vdwg.mxu0
  %132 = vrot.lane.b32.xlu0 %v34, 4
  %v133 = vpop.permute.xlu0 %132
  %134 = vrot.lane.b32.xlu0 %v35, 4
  %v135 = vpop.permute.xlu0 %134
  %vm136 = vcmask 31744
  %v137 = vsel %vm136, %v133, %v135
  %v140 = vsel %vm50, %v36, 0
  %v143 = vsel %vm50, %v37, 0
  %145 = vmatprep.subr.mxu0 0.0
  %146 = vmatpush1.msra.mxu0 0.0
  %147 = vmatprep.subr.mxu0 0.0
  %148 = vmatpush1.msra.mxu0 0.0
  %149 = vmatprep.subr.mxu0 0.0
  %150 = vmatpush1.msra.mxu0 0.0
  %151 = vmatprep.subr.mxu0 0.0
  %152 = vmatpush1.msra.mxu0 0.0
  %153 = vmatprep.subr.mxu0 0.0
  %154 = vmatpush1.msra.mxu0 0.0
  %155 = vmatprep.subr.mxu0 0.0
  %156 = vmatpush1.msra.mxu0 0.0
  %157 = vmatprep.subr.mxu0 0.0
  %158 = vmatpush1.msra.mxu0 0.0
  %159 = vmatprep.subr.mxu0 0.0
  %160 = vmatpush1.msra.mxu0 0.0
  %161 = vmatprep.subr.mxu0 0.0
  %162 = vmatpush1.msra.mxu0 0.0
  %163 = vmatprep.subr.mxu0 0.0
  %164 = vmatpush1.msra.mxu0 0.0
  %165 = vmatprep.subr.mxu0 0.0
  %166 = vmatpush1.msra.mxu0 0.0
  %167 = vmatprep.subr.mxu0 0.0
  %168 = vmatpush1.msra.mxu0 0.0
  %169 = vmatprep.subr.mxu0 0.0
  %170 = vmatpush1.msra.mxu0 0.0
  %171 = vmatprep.subr.mxu0 0.0
  %172 = vmatpush1.msra.mxu0 0.0
  %173 = vmatprep.subr.mxu0 0.0
  %174 = vmatpush1.msra.mxu0 0.0
  %175 = vmatprep.subr.mxu0 0.0
  %176 = vmatpush1.msra.mxu0 %v137
  %177 = vmatprep.subr.mxu0 0.0
  %178 = vmatpush2.msra.mxu0 0.0
  %179 = vmatprep.subr.mxu0 0.0
  %180 = vmatpush2.msra.mxu0 0.0
  %181 = vmatprep.subr.mxu0 0.0
  %182 = vmatpush2.msra.mxu0 0.0
  %183 = vmatprep.subr.mxu0 0.0
  %184 = vmatpush2.msra.mxu0 0.0
  %185 = vmatprep.subr.mxu0 0.0
  %186 = vmatpush2.msra.mxu0 0.0
  %187 = vmatprep.subr.mxu0 0.0
  %188 = vmatpush2.msra.mxu0 0.0
  %189 = vmatprep.subr.mxu0 0.0
  %190 = vmatpush2.msra.mxu0 0.0
  %191 = vmatprep.subr.mxu0 0.0
  %192 = vmatpush2.msra.mxu0 0.0
  %193 = vmatprep.subr.mxu0 0.0
  %194 = vmatpush2.msra.mxu0 0.0
  %195 = vmatprep.subr.mxu0 0.0
  %196 = vmatpush2.msra.mxu0 0.0
  %197 = vmatprep.subr.mxu0 0.0
  %198 = vmatpush2.msra.mxu0 0.0
  %199 = vmatprep.subr.mxu0 0.0
  %200 = vmatpush2.msra.mxu0 0.0
  %201 = vmatprep.subr.mxu0 0.0
  %202 = vmatpush2.msra.mxu0 0.0
  %203 = vmatprep.subr.mxu0 0.0
  %204 = vmatpush2.msra.mxu0 0.0
  %205 = vmatprep.subr.mxu0 0.0
  %206 = vmatpush2.msra.mxu0 0.0
  %207 = vmatprep.subr.mxu0 0.0
  %208 = vmatpush2.msra.mxu0 0.0
  %209 = vmatprep.mubr.f32.mxu0 0.0
  %210 = vmatmul.mubr.f32.gmra.mxu0 %v140
  %v211 = vpop.f32.mrf.mxu0
  %v212 = vadd.f32 %v124, %v211
  %v213 = vpop.f32.mrf.mxu0
  %214 = vmatprep.mubr.f32.mxu0 0.0
  %215 = vmatmul.mubr.f32.gmra.mxu0 %v143
  %v216 = vpop.f32.mrf.mxu0
  %v217 = vadd.f32 %v129, %v216
  %v218 = vpop.f32.mrf.mxu0
  %219 = vdwg.mxu0
  %s220 = scalar_lea.vmem %s1, 32
  %v221 = vld [vmem:[%s220] sm:$0xff]
  %v222 = vld [vmem:[%s220 + $0x8] sm:$0xf]
  %v224 = vsel %vm50, %v221, 0
  %v227 = vsel %vm50, %v222, 0
  %229 = vmatprep.subr.mxu0 0.0
  %230 = vmatpush1.msra.mxu0 0.0
  %231 = vmatprep.subr.mxu0 0.0
  %232 = vmatpush1.msra.mxu0 0.0
  %233 = vmatprep.subr.mxu0 0.0
  %234 = vmatpush1.msra.mxu0 0.0
  %235 = vmatprep.subr.mxu0 0.0
  %236 = vmatpush1.msra.mxu0 0.0
  %237 = vmatprep.subr.mxu0 0.0
  %238 = vmatpush1.msra.mxu0 0.0
  %239 = vmatprep.subr.mxu0 0.0
  %240 = vmatpush1.msra.mxu0 0.0
  %241 = vmatprep.subr.mxu0 0.0
  %242 = vmatpush1.msra.mxu0 0.0
  %243 = vmatprep.subr.mxu0 0.0
  %244 = vmatpush1.msra.mxu0 0.0
  %245 = vmatprep.subr.mxu0 0.0
  %246 = vmatpush1.msra.mxu0 0.0
  %247 = vmatprep.subr.mxu0 0.0
  %248 = vmatpush1.msra.mxu0 0.0
  %249 = vmatprep.subr.mxu0 0.0
  %250 = vmatpush1.msra.mxu0 0.0
  %251 = vmatprep.subr.mxu0 0.0
  %252 = vmatpush1.msra.mxu0 0.0
  %253 = vmatprep.subr.mxu0 0.0
  %254 = vmatpush1.msra.mxu0 0.0
  %255 = vmatprep.subr.mxu0 0.0
  %256 = vmatpush1.msra.mxu0 0.0
  %257 = vmatprep.subr.mxu0 0.0
  %258 = vmatpush1.msra.mxu0 0.0
  %259 = vmatprep.subr.mxu0 0.0
  %260 = vmatpush1.msra.mxu0 %v35
  %261 = vmatprep.subr.mxu0 0.0
  %262 = vmatpush2.msra.mxu0 0.0
  %263 = vmatprep.subr.mxu0 0.0
  %264 = vmatpush2.msra.mxu0 0.0
  %265 = vmatprep.subr.mxu0 0.0
  %266 = vmatpush2.msra.mxu0 0.0
  %267 = vmatprep.subr.mxu0 0.0
  %268 = vmatpush2.msra.mxu0 0.0
  %269 = vmatprep.subr.mxu0 0.0
  %270 = vmatpush2.msra.mxu0 0.0
  %271 = vmatprep.subr.mxu0 0.0
  %272 = vmatpush2.msra.mxu0 0.0
  %273 = vmatprep.subr.mxu0 0.0
  %274 = vmatpush2.msra.mxu0 0.0
  %275 = vmatprep.subr.mxu0 0.0
  %276 = vmatpush2.msra.mxu0 0.0
  %277 = vmatprep.subr.mxu0 0.0
  %278 = vmatpush2.msra.mxu0 0.0
  %279 = vmatprep.subr.mxu0 0.0
  %280 = vmatpush2.msra.mxu0 0.0
  %281 = vmatprep.subr.mxu0 0.0
  %282 = vmatpush2.msra.mxu0 0.0
  %283 = vmatprep.subr.mxu0 0.0
  %284 = vmatpush2.msra.mxu0 0.0
  %285 = vmatprep.subr.mxu0 0.0
  %286 = vmatpush2.msra.mxu0 0.0
  %287 = vmatprep.subr.mxu0 0.0
  %288 = vmatpush2.msra.mxu0 0.0
  %289 = vmatprep.subr.mxu0 0.0
  %290 = vmatpush2.msra.mxu0 0.0
  %291 = vmatprep.subr.mxu0 0.0
  %292 = vmatpush2.msra.mxu0 0.0
  %293 = vmatprep.mubr.f32.mxu0 0.0
  %294 = vmatmul.mubr.f32.gmra.mxu0 %v224
  %v295 = vpop.f32.mrf.mxu0
  %v296 = vadd.f32 0.0, %v295
  %v297 = vpop.f32.mrf.mxu0
  %298 = vmatprep.mubr.f32.mxu0 0.0
  %299 = vmatmul.mubr.f32.gmra.mxu0 %v227
  %v300 = vpop.f32.mrf.mxu0
  %v301 = vadd.f32 0.0, %v300
  %v302 = vpop.f32.mrf.mxu0
  %303 = vdwg.mxu0
  %v304 = vadd.f32 %v212, %v296
  %v305 = vadd.f32 %v217, %v301
  %v306 = vld [vmem:[%s2] sm:$0xff]
  %v307 = vld [vmem:[%s2 + $0x8] sm:$0xf]
  %309 = vset.pattern.permute.xlu0 0
  %310 = vperm.xlu0 %309, %v306
  %v311 = vpop.permute.xlu0 %310
  %314 = vset.pattern.permute.xlu0 0
  %315 = vperm.xlu0 %314, %v307
  %v316 = vpop.permute.xlu0 %315
  %v318 = vadd.f32 %v304, %v311
  %v319 = vadd.f32 %v305, %v316
  %320 = vst.msk [vmem:[%s3] sm:$0xff] %vm32, %v318
  %vm321 = vcmask 125952
  %322 = vst.msk [vmem:[%s3 + $0x8] sm:$0xf] %vm321, %v319
  // Predicated region
  $region22: #{tpu_custom_call.1} parent=0 // pred_check
    _
  $region23: #{tpu_custom_call.1} parent=0 // pred_check_branch
    %324 = sbr.rel (0) target = $region25
  $region24: #{tpu_custom_call.1} parent=0 // pred_region
    _
  $region25: #{tpu_custom_call.1} parent=0 // pred_fallthru
    _
  // Predicated region
  $region26: #{tpu_custom_call.1} parent=0 // pred_check
    _
  $region27: #{tpu_custom_call.1} parent=0 // pred_check_branch
    %326 = sbr.rel (0) target = $region29
  $region28: #{tpu_custom_call.1} parent=0 // pred_region
    _
  $region29: #{tpu_custom_call.1} parent=0 // pred_fallthru
    _

</llo_original>
